<compile_context>
chip_gen: v6e
topology: v6e:2x2x1
jax: 0.10.0
libtpu: 0.0.40
codegen_flags: <defaults>
</compile_context>

<pallas_src>
import functools

import jax
import jax.numpy as jnp
from jax import lax
from jax.experimental import pallas as pl
from jax.experimental.pallas import tpu as pltpu


def _unshuffle_kernel(x_ref, o_ref, *, r, oh, ow, c_blk):
    """x_ref: (C_BLK, H, W)  ->  o_ref: (C_BLK*r*r, OH, OW)."""

    def per_channel(cl, carry):
        xc = x_ref[cl]                               # (H, W), dynamic leading-dim index
        xc = xc.reshape(oh, r, ow, r)                # split both spatial dims
        xc = jnp.transpose(xc, (1, 3, 0, 2))         # (r, r, OH, OW)
        start = pl.multiple_of(cl * (r * r), r * r)
        o_ref[pl.ds(start, r * r)] = xc.reshape(r * r, oh, ow)
        return carry

    lax.fori_loop(0, c_blk, per_channel, 0)


def _choose_channel_block(b, c, h, w, oh, ow, r, itemsize):
    """Largest divisor of C whose padded (input+output) tile fits the per-copy budget."""
    pack = 8 * max(1, 4 // itemsize)                 # sublane packing: 8/16/32 for 4/2/1B

    def padded_bytes(rows, cols):
        pr = -(-rows // pack) * pack
        pc = -(-cols // 128) * 128                   # lanes pad to 128
        return pr * pc * itemsize

    in_per_c = padded_bytes(h, w)
    out_per_c = r * r * padded_bytes(oh, ow)
    budget = 8 * 1024 * 1024                         # per copy; x2 double-buffer ~16 MiB

    c_blk = 1
    for cand in range(c, 0, -1):
        if c % cand == 0 and cand * (in_per_c + out_per_c) <= budget:
            c_blk = cand
            break

    # v7x has 2 TensorCores sharing HBM: keep at least 2 parallel grid steps if possible.
    if b * (c // c_blk) < 2 and c > 1:
        for cand in range(c_blk - 1, 0, -1):
            if c % cand == 0:
                c_blk = cand
                break
    return c_blk


def pixel_unshuffle(x, upscale_factor):
    """Pallas TPU implementation of PixelUnShuffle (NCHW)."""
    r = int(upscale_factor)
    b, c, h, w = x.shape
    assert h % r == 0 and w % r == 0, "spatial dims must be divisible by upscale_factor"
    oh, ow = h // r, w // r
    out_c = c * r * r
    itemsize = jnp.dtype(x.dtype).itemsize

    c_blk = _choose_channel_block(b, c, h, w, oh, ow, r, itemsize)
    kernel = functools.partial(_unshuffle_kernel, r=r, oh=oh, ow=ow, c_blk=c_blk)

    return pl.pallas_call(
        kernel,
        out_shape=jax.ShapeDtypeStruct((b, out_c, oh, ow), x.dtype),
        grid_spec=pltpu.PrefetchScalarGridSpec(
            num_scalar_prefetch=0,
            grid=(b, c // c_blk),
            in_specs=[
                # batch dim squeezed; one block = a contiguous slab of C_BLK channels
                pl.BlockSpec((None, c_blk, h, w), lambda bi, ci: (bi, ci, 0, 0)),
            ],
            out_specs=pl.BlockSpec(
                (None, c_blk * r * r, oh, ow), lambda bi, ci: (bi, ci, 0, 0)
            ),
        ),
        compiler_params=pltpu.CompilerParams(
            dimension_semantics=("parallel", "parallel"),
            vmem_limit_bytes=32 * 1024 * 1024,
        ),
    )(x)


def _reference_pixel_unshuffle(x, r):
    b, c, h, w = x.shape
    oh, ow = h // r, w // r
    xv = x.reshape(b, c, oh, r, ow, r)
    xv = jnp.transpose(xv, (0, 1, 3, 5, 2, 4))
    return xv.reshape(b, c * r * r, oh, ow)


if __name__ == "__main__":
    key = jax.random.PRNGKey(0)
    B, C, H, W = 2, 4, 16, 16
    upscale_factor = 2

    x = jax.random.normal(key, (B, C, H, W), dtype=jnp.float32)

    out = pixel_unshuffle(x, upscale_factor)
    out = jax.block_until_ready(out)

    ref = _reference_pixel_unshuffle(x, upscale_factor)
    assert out.shape == (B, C * upscale_factor ** 2, H // upscale_factor, W // upscale_factor)
    assert bool(jnp.all(out == ref)), "Pallas PixelUnShuffle mismatch vs reference"

    print("KERNEL_OK")
</pallas_src>

<mosaic_0001>
module attributes {stable_mosaic.version = 11 : i64} {
  func.func @_unshuffle_kernel(%arg0: i32, %arg1: i32, %arg2: memref<1x4x16x16xf32, #tpu.memory_space<vmem>>, %arg3: memref<1x16x8x8xf32, #tpu.memory_space<vmem>>) attributes {dimension_semantics = [#tpu.dimension_semantics<parallel>, #tpu.dimension_semantics<parallel>], iteration_bounds = array<i64: 2, 1>, scalar_prefetch = 0 : i64, scratch_operands = 0 : i64, tpu.core_type = #tpu.core_type<tc>, window_params = [{transform_indices = @transform_0, window_bounds = array<i64: 1, 4, 16, 16>}, {transform_indices = @transform_1, window_bounds = array<i64: 1, 16, 8, 8>}]} {
    %c0_i32 = arith.constant 0 : i32
    %c4_i32 = arith.constant 4 : i32
    %0 = arith.addi %c0_i32, %c4_i32 : i32
    %c1_i32 = arith.constant 1 : i32
    scf.for %arg4 = %c0_i32 to %0 step %c1_i32  : i32 {
      %c0 = arith.constant 0 : index
      %1 = arith.index_cast %arg4 : i32 to index
      %c0_1 = arith.constant 0 : index
      %c0_2 = arith.constant 0 : index
      %2 = vector.load %arg2[%c0, %1, %c0_1, %c0_2] : memref<1x4x16x16xf32, #tpu.memory_space<vmem>>, vector<1x1x16x16xf32>
      %3 = vector.shape_cast %2 : vector<1x1x16x16xf32> to vector<16x16xf32>
      %4 = vector.shape_cast %3 : vector<16x16xf32> to vector<8x2x8x2xf32>
      %5 = tpu.transpose %4, [1, 3, 0, 2] : vector<8x2x8x2xf32> -> vector<2x2x8x8xf32>
      %c4_i32_3 = arith.constant 4 : i32
      %6 = arith.muli %arg4, %c4_i32_3 : i32
      %7 = tpu.assume_multiple %6, 4 : i32
      %8 = vector.shape_cast %5 : vector<2x2x8x8xf32> to vector<4x8x8xf32>
      %c0_4 = arith.constant 0 : index
      %9 = arith.index_cast %7 : i32 to index
      %c0_5 = arith.constant 0 : index
      %c0_6 = arith.constant 0 : index
      %10 = vector.load %arg3[%c0_4, %9, %c0_5, %c0_6] : memref<1x16x8x8xf32, #tpu.memory_space<vmem>>, vector<1x4x8x8xf32>
      %11 = vector.shape_cast %10 : vector<1x4x8x8xf32> to vector<4x8x8xf32>
      %12 = vector.shape_cast %8 : vector<4x8x8xf32> to vector<1x4x8x8xf32>
      tpu.vector_store %arg3[%c0_4, %9, %c0_5, %c0_6], %12 {strides = array<i32>} : memref<1x16x8x8xf32, #tpu.memory_space<vmem>>, vector<1x4x8x8xf32>,
    }
    %c4_i32_0 = arith.constant 4 : i32
    return
  }
  func.func @transform_0(%arg0: i32, %arg1: i32) -> (i32, i32, i32, i32) {
    %c0_i32 = arith.constant 0 : i32
    %c0_i32_0 = arith.constant 0 : i32
    %c0_i32_1 = arith.constant 0 : i32
    return %arg0, %arg1, %c0_i32, %c0_i32_0 : i32, i32, i32, i32
  }
  func.func @transform_1(%arg0: i32, %arg1: i32) -> (i32, i32, i32, i32) {
    %c0_i32 = arith.constant 0 : i32
    %c0_i32_0 = arith.constant 0 : i32
    %c0_i32_1 = arith.constant 0 : i32
    return %arg0, %arg1, %c0_i32, %c0_i32_0 : i32, i32, i32, i32
  }
}

</mosaic_0001>

<llo_original>
// kernel: tpu_custom_call.1
$region0: #{tpu_custom_call.1}
  #allocation0 [shape = 'u32[]', space=smem, size = 0x4, offset = 0x4, fixed_abs, tag = 'smem constant byte address 0x4 - core index']
  #allocation1 [shape = 'u32[144,128]{1,0:T(1,128)}', space=vmem, size = 0x12000, scoped, tag = 'internal scratch']
  %s0 = inlined_call_operand.hbm [shape: f32[2,4,16,16], index: 0, kind: input, shape index: {}]
  %s1 = inlined_call_operand.vmem [shape: f32[2,16,8,8], index: 1, kind: output, shape index: {}]
  %s2 = sld [smem:[#allocation0]]
  $region48: #{tpu_custom_call.1} parent=0
    _
  %s4 = ssub.s32 1, %s2
  %s5 = scalar_select 0, %s4, %s2
  $region1: #{tpu_custom_call.1} parent=0
    #allocation2 [shape = 'u8[65536]{0}', space=vmem, size = 0x10000, scoped, tag = 'input window, operand 0']
    #allocation3 [shape = 's32[2]{0}', space=sflag, size = 0x8, scoped, tag = 'scoped memory for tpu_custom_call.1']
    %6 = vsyncpa [#allocation3], 0
    %s7 = scalar_lea.sflag [#allocation3], 1
    %8 = vsyncpa %s7, 0
    loop: start=0, step=1, limit=4
    $region2: #{tpu_custom_call.1} parent=1 // loop_pre_header
      _
    $region3: #{tpu_custom_call.1} parent=1 // loop_header
      %s10 = sphi 0, %s14
      %p11 = scmp.ge.s32.totalorder %s10, 4
      %s17 = sphi 0, %s29
      %s18 = sphi 0, %s25
      %s19 = sphi 0, %s17
      %s20 = sphi 0, %s18
      %s21 = sphi 0, %s19
      %s22 = sphi 0, %s20
      %s34 = sphi 0, %s36
      %s37 = sphi 0, %s34
      %s38 = sphi 0, %s37
      %s54 = sphi 0, %s38
      %s62 = sphi 0, %s64
      %s65 = sphi 0, %s62
      %s66 = sphi 0, %s65
      %s82 = sphi 0, %s66
    $region4: #{tpu_custom_call.1} parent=1 // loop_header_branch
      %13 = sbr.rel (%p11) target = $region8
    $region5: #{tpu_custom_call.1} parent=1 // loop_body
      %s15 = ssub.s32 %s10, 1
      %s16 = ssub.s32 %s10, 2
      %s23 = sadd.s32 1, %s18
      %p24 = scmp.ge.s32.totalorder %s23, 1
      %s25 = scalar_select %p24, 0, %s23
      %s26 = sadd.s32 1, %s17
      %s27 = scalar_select %p24, %s26, %s17
      %p28 = scmp.ge.s32.totalorder %s27, 2
      %s29 = scalar_select %p28, 0, %s27
      %s30 = ssub.s32 %s17, %s29
      %s31 = ssub.s32 %s18, %s25
      %s32 = sor.u32 %s30, %s31
      %p33 = scmp.eq.s32.totalorder %s32, 0
      %s35 = sadd.s32 %s34, 1
      %s36 = scalar_select %p33, %s34, %s35
      %p39 = pneg %p33
      %p40 = scmp.eq.s32.totalorder %s10, 1
      %p41 = por %p39, %p40
      %p42 = scmp.ne.s32.totalorder %s34, %s37
      %p43 = scmp.eq.s32.totalorder %s10, 0
      %p44 = por %p42, %p43
      %p45 = scmp.ne.s32.totalorder %s34, %s37
      %p46 = scmp.eq.s32.totalorder %s15, 1
      %p47 = por %p45, %p46
      %p48 = scmp.ne.s32.totalorder %s37, %s38
      %p49 = scmp.eq.s32.totalorder %s15, 0
      %p50 = por %p48, %p49
      %p51 = scmp.ne.s32.totalorder %s37, %s38
      %p52 = scmp.eq.s32.totalorder %s16, 1
      %p53 = por %p51, %p52
      %p55 = scmp.ne.s32.totalorder %s38, %s54
      %p56 = scmp.eq.s32.totalorder %s16, 0
      %p57 = por %p55, %p56
      %s58 = ssub.s32 %s17, %s29
      %s59 = ssub.s32 %s18, %s25
      %s60 = sor.u32 %s58, %s59
      %p61 = scmp.eq.s32.totalorder %s60, 0
      %s63 = sadd.s32 %s62, 1
      %s64 = scalar_select %p61, %s62, %s63
      %p67 = pneg %p61
      %p68 = scmp.eq.s32.totalorder %s10, 1
      %p69 = por %p67, %p68
      %p70 = scmp.ne.s32.totalorder %s62, %s65
      %p71 = scmp.eq.s32.totalorder %s10, 0
      %p72 = por %p70, %p71
      %p73 = scmp.ne.s32.totalorder %s62, %s65
      %p74 = scmp.eq.s32.totalorder %s15, 1
      %p75 = por %p73, %p74
      %p76 = scmp.ne.s32.totalorder %s65, %s66
      %p77 = scmp.eq.s32.totalorder %s15, 0
      %p78 = por %p76, %p77
      %p79 = scmp.ne.s32.totalorder %s65, %s66
      %p80 = scmp.eq.s32.totalorder %s16, 1
      %p81 = por %p79, %p80
      %p83 = scmp.ne.s32.totalorder %s66, %s82
      %p84 = scmp.eq.s32.totalorder %s16, 0
      %p85 = por %p83, %p84
      %p86 = scmp.le.s32.totalorder 1, %s10
      %p87 = scmp.lt.s32.totalorder %s10, 3
      %p88 = pnand %p86, %p87
      %p89 = pneg %p88
      // Predicated region
      $region9: #{tpu_custom_call.1} parent=5 // pred_check
        _
      $region10: #{tpu_custom_call.1} parent=5 // pred_check_branch
        %91 = sbr.rel (%p88) target = $region12
      $region11: #{tpu_custom_call.1} parent=5 // pred_region
        %s92 = ssub.s32 %s10, 1
      $region12: #{tpu_custom_call.1} parent=5 // pred_fallthru
        _
      %p93 = scmp.lt.s32.totalorder %s10, 2
      // Predicated region
      $region13: #{tpu_custom_call.1} parent=5 // pred_check
        %p94 = pneg %p93
      $region14: #{tpu_custom_call.1} parent=5 // pred_check_branch
        %96 = sbr.rel (%p94) target = $region16
      $region15: #{tpu_custom_call.1} parent=5 // pred_region
        // Predicated region
        $region17: #{tpu_custom_call.1} parent=15 // pred_check
          %p97 = pneg %p44
        $region18: #{tpu_custom_call.1} parent=15 // pred_check_branch
          %99 = sbr.rel (%p97) target = $region20
        $region19: #{tpu_custom_call.1} parent=15 // pred_region
          %s100 = sand.u32 %s34, 1
          %s101 = scalar_lea.sflag [#allocation3], %s100
          %s102 = sand.u32 %s34, 1
          %s103 = smul.addr %s102, 64
          %s104 = scalar_lea.vmem [#allocation2], %s103
          %s105 = smul.u32 4, %s18
          %s107 = ssub.s32 1024, 1024
          %108 = vsyncadd %s101, %s107
          %s109 = smul.addr %s105, 2
          %s110 = smul.addr %s17, 8
          %s111 = sadd.s32 %s109, %s110
          %s112 = smul.addr %s111, 128
          %s113 = scalar_lea.hbm %s0, %s112
          %s114 = sshll.u32 %s104, 4
          %s115 = int_to_ptr.vmem [resolvable:$true] %s114
          %120 = dma.hbm_to_vmem [thread:$0]  %s113, 1024, %s115, %s101, 128, 128, 8
        $region20: #{tpu_custom_call.1} parent=15 // pred_fallthru
          _
      $region16: #{tpu_custom_call.1} parent=5 // pred_fallthru
        _
      %p121 = scmp.le.s32.totalorder 1, %s10
      %p122 = scmp.lt.s32.totalorder %s10, 3
      %p123 = pnand %p121, %p122
      %p124 = pneg %p123
      // Predicated region
      $region21: #{tpu_custom_call.1} parent=5 // pred_check
        _
      $region22: #{tpu_custom_call.1} parent=5 // pred_check_branch
        %126 = sbr.rel (%p123) target = $region24
      $region23: #{tpu_custom_call.1} parent=5 // pred_region
        %s127 = ssub.s32 %s10, 1
        %s128 = sand.u32 %s37, 1
        %s129 = scalar_lea.sflag [#allocation3], %s128
        %s130 = sand.u32 %s37, 1
        %s131 = smul.addr %s130, 64
        %s132 = scalar_lea.vmem [#allocation2], %s131
        // Predicated region
        $region25: #{tpu_custom_call.1} parent=23 // pred_check
          %p133 = pneg %p50
        $region26: #{tpu_custom_call.1} parent=23 // pred_check_branch
          %135 = sbr.rel (%p133) target = $region28
        $region27: #{tpu_custom_call.1} parent=23 // pred_region
          %136 = dma.done %s129, 1024
        $region28: #{tpu_custom_call.1} parent=23 // pred_fallthru
          _
        %s137 = sand.u32 %s37, 1
        %s138 = scalar_lea.sflag [#allocation3], %s137
        %s139 = sand.u32 %s37, 1
        %s140 = smul.addr %s139, 64
        %s141 = scalar_lea.vmem [#allocation2], %s140
        %p142 = pneg %p50
        %p143 = pneg %p47
        %p144 = pneg %p78
        %p145 = pneg %p75
        %s146 = smul.u32 16, %s20
        %p147 = scmp.lt.s32.totalorder %s19, 1
        %s148 = scalar_select %p147, %s19, 1
        %p149 = scmp.lt.s32.totalorder %s146, 15
        %s150 = scalar_select %p149, %s146, 15
        %s151 = smul.addr %s148, 16
        %s152 = sadd.s32 %s150, %s151
        %s153 = smul.addr %s152, 8
        %s154 = scalar_lea.vmem %s1, %s153
        %s155 = smul.u32 4, %s20
        %s156 = smul.u32 16, %s20
        %p157 = scmp.lt.s32.totalorder %s19, 1
        %s158 = scalar_select %p157, %s19, 1
        %p159 = scmp.lt.s32.totalorder %s156, 15
        %s160 = scalar_select %p159, %s156, 15
        %s161 = smul.addr %s158, 16
        %s162 = sadd.s32 %s160, %s161
        %s163 = smul.addr %s162, 8
        %s164 = scalar_lea.vmem %s1, %s163
        %s165 = smul.u32 16, %s20
        loop: start=0, step=1, limit=4
        $region29: #{tpu_custom_call.1} parent=23 // loop_pre_header
          _
        $region30: #{tpu_custom_call.1} parent=23 // loop_header
          %s167 = sphi 0, %s171
          %p168 = scmp.ge.s32.totalorder %s167, 4
        $region31: #{tpu_custom_call.1} parent=23 // loop_header_branch
          %170 = sbr.rel (%p168) target = $region35
        $region32: #{tpu_custom_call.1} parent=23 // loop_body
          %s172 = smul.u32 %s167, 16
          %s173 = scalar_lea.vmem %s132, %s172 [#allocation2]
          %v174 = vld [vmem:[%s173] sm:$0xff]
          %v175 = vld [vmem:[%s173 + $0x8] sm:$0xff]
          %178 = vrot.lane.b32.xlu0 %v174, 126
          %v179 = vpop.permute.xlu0 %178
          %180 = vrot.lane.b32.xlu0 %v175, 126
          %v181 = vpop.permute.xlu0 %180
          %184 = vrot.lane.b32.xlu0 %v174, 124
          %v185 = vpop.permute.xlu0 %184
          %186 = vrot.lane.b32.xlu0 %v175, 124
          %v187 = vpop.permute.xlu0 %186
          %190 = vrot.lane.b32.xlu0 %v174, 122
          %v191 = vpop.permute.xlu0 %190
          %192 = vrot.lane.b32.xlu0 %v175, 122
          %v193 = vpop.permute.xlu0 %192
          %196 = vrot.lane.b32.xlu0 %v174, 120
          %v197 = vpop.permute.xlu0 %196
          %198 = vrot.lane.b32.xlu0 %v175, 120
          %v199 = vpop.permute.xlu0 %198
          %202 = vrot.lane.b32.xlu0 %v174, 118
          %v203 = vpop.permute.xlu0 %202
          %204 = vrot.lane.b32.xlu0 %v175, 118
          %v205 = vpop.permute.xlu0 %204
          %208 = vrot.lane.b32.xlu0 %v174, 116
          %v209 = vpop.permute.xlu0 %208
          %210 = vrot.lane.b32.xlu0 %v175, 116
          %v211 = vpop.permute.xlu0 %210
          %214 = vrot.lane.b32.xlu0 %v174, 114
          %v215 = vpop.permute.xlu0 %214
          %216 = vrot.lane.b32.xlu0 %v175, 114
          %v217 = vpop.permute.xlu0 %216
          %v220 = vcombine.low %v174, %v185
          %v221 = vcombine.high %v174, %v185
          %v223 = vunpack.c.l.s4 1983009808
          %v224 = vunpack.c.0.s8 %v223
          %v225 = vlaneseq
          %v226 = vshrl.u32 %v225, 7
          %v227 = vsub.s32 %v224, %v226
          %v228 = vrot.slane %v220, %v227
          %v230 = vunpack.c.l.s4 1983009808
          %v231 = vunpack.c.0.s8 %v230
          %v232 = vlaneseq
          %v233 = vshrl.u32 %v232, 7
          %v234 = vsub.s32 %v231, %v233
          %v235 = vrot.slane %v221, %v234
          %v236 = vcombine.low %v179, %v191
          %v237 = vcombine.high %v179, %v191
          %v239 = vunpack.c.l.s4 1983009808
          %v240 = vunpack.c.0.s8 %v239
          %v241 = vlaneseq
          %v242 = vshrl.u32 %v241, 7
          %v243 = vsub.s32 %v240, %v242
          %v244 = vrot.slane %v236, %v243
          %v246 = vunpack.c.l.s4 1983009808
          %v247 = vunpack.c.0.s8 %v246
          %v248 = vlaneseq
          %v249 = vshrl.u32 %v248, 7
          %v250 = vsub.s32 %v247, %v249
          %v251 = vrot.slane %v237, %v250
          %v252 = vcombine.low %v197, %v209
          %v253 = vcombine.high %v197, %v209
          %v255 = vunpack.c.l.s4 1983009808
          %v256 = vunpack.c.0.s8 %v255
          %v257 = vlaneseq
          %v258 = vshrl.u32 %v257, 7
          %v259 = vsub.s32 %v256, %v258
          %v260 = vrot.slane %v252, %v259
          %v262 = vunpack.c.l.s4 1983009808
          %v263 = vunpack.c.0.s8 %v262
          %v264 = vlaneseq
          %v265 = vshrl.u32 %v264, 7
          %v266 = vsub.s32 %v263, %v265
          %v267 = vrot.slane %v253, %v266
          %v268 = vcombine.low %v203, %v215
          %v269 = vcombine.high %v203, %v215
          %v271 = vunpack.c.l.s4 1983009808
          %v272 = vunpack.c.0.s8 %v271
          %v273 = vlaneseq
          %v274 = vshrl.u32 %v273, 7
          %v275 = vsub.s32 %v272, %v274
          %v276 = vrot.slane %v268, %v275
          %v278 = vunpack.c.l.s4 1983009808
          %v279 = vunpack.c.0.s8 %v278
          %v280 = vlaneseq
          %v281 = vshrl.u32 %v280, 7
          %v282 = vsub.s32 %v279, %v281
          %v283 = vrot.slane %v269, %v282
          %v284 = vcombine.low %v228, %v244
          %v285 = vcombine.high %v228, %v244
          %v287 = vunpack.c.l.s4 1934713408
          %v288 = vunpack.c.0.s8 %v287
          %v289 = vlaneseq
          %v290 = vshrl.u32 %v289, 7
          %v291 = vsub.s32 %v288, %v290
          %v292 = vrot.slane %v284, %v291
          %v294 = vunpack.c.l.s4 1934713408
          %v295 = vunpack.c.0.s8 %v294
          %v296 = vlaneseq
          %v297 = vshrl.u32 %v296, 7
          %v298 = vsub.s32 %v295, %v297
          %v299 = vrot.slane %v285, %v298
          %v300 = vcombine.low %v235, %v251
          %v301 = vcombine.high %v235, %v251
          %v303 = vunpack.c.l.s4 1934713408
          %v304 = vunpack.c.0.s8 %v303
          %v305 = vlaneseq
          %v306 = vshrl.u32 %v305, 7
          %v307 = vsub.s32 %v304, %v306
          %v308 = vrot.slane %v300, %v307
          %v310 = vunpack.c.l.s4 1934713408
          %v311 = vunpack.c.0.s8 %v310
          %v312 = vlaneseq
          %v313 = vshrl.u32 %v312, 7
          %v314 = vsub.s32 %v311, %v313
          %v315 = vrot.slane %v301, %v314
          %v316 = vcombine.low %v260, %v276
          %v317 = vcombine.high %v260, %v276
          %v319 = vunpack.c.l.s4 1934713408
          %v320 = vunpack.c.0.s8 %v319
          %v321 = vlaneseq
          %v322 = vshrl.u32 %v321, 7
          %v323 = vsub.s32 %v320, %v322
          %v324 = vrot.slane %v316, %v323
          %v326 = vunpack.c.l.s4 1934713408
          %v327 = vunpack.c.0.s8 %v326
          %v328 = vlaneseq
          %v329 = vshrl.u32 %v328, 7
          %v330 = vsub.s32 %v327, %v329
          %v331 = vrot.slane %v317, %v330
          %v332 = vcombine.low %v267, %v283
          %v333 = vcombine.high %v267, %v283
          %v335 = vunpack.c.l.s4 1934713408
          %v336 = vunpack.c.0.s8 %v335
          %v337 = vlaneseq
          %v338 = vshrl.u32 %v337, 7
          %v339 = vsub.s32 %v336, %v338
          %v340 = vrot.slane %v332, %v339
          %v342 = vunpack.c.l.s4 1934713408
          %v343 = vunpack.c.0.s8 %v342
          %v344 = vlaneseq
          %v345 = vshrl.u32 %v344, 7
          %v346 = vsub.s32 %v343, %v345
          %v347 = vrot.slane %v333, %v346
          %v348 = vcombine.low %v292, %v324
          %v349 = vcombine.high %v292, %v324
          %v350 = vcombine.low %v299, %v331
          %v351 = vcombine.high %v299, %v331
          %v352 = vcombine.low %v308, %v340
          %v353 = vcombine.high %v308, %v340
          %v354 = vcombine.low %v315, %v347
          %v355 = vcombine.high %v315, %v347
          %v356 = vcombine.low %v175, %v187
          %v357 = vcombine.high %v175, %v187
          %v359 = vunpack.c.l.s4 1983009808
          %v360 = vunpack.c.0.s8 %v359
          %v361 = vlaneseq
          %v362 = vshrl.u32 %v361, 7
          %v363 = vsub.s32 %v360, %v362
          %v364 = vrot.slane %v356, %v363
          %v366 = vunpack.c.l.s4 1983009808
          %v367 = vunpack.c.0.s8 %v366
          %v368 = vlaneseq
          %v369 = vshrl.u32 %v368, 7
          %v370 = vsub.s32 %v367, %v369
          %v371 = vrot.slane %v357, %v370
          %v372 = vcombine.low %v181, %v193
          %v373 = vcombine.high %v181, %v193
          %v375 = vunpack.c.l.s4 1983009808
          %v376 = vunpack.c.0.s8 %v375
          %v377 = vlaneseq
          %v378 = vshrl.u32 %v377, 7
          %v379 = vsub.s32 %v376, %v378
          %v380 = vrot.slane %v372, %v379
          %v382 = vunpack.c.l.s4 1983009808
          %v383 = vunpack.c.0.s8 %v382
          %v384 = vlaneseq
          %v385 = vshrl.u32 %v384, 7
          %v386 = vsub.s32 %v383, %v385
          %v387 = vrot.slane %v373, %v386
          %v388 = vcombine.low %v199, %v211
          %v389 = vcombine.high %v199, %v211
          %v391 = vunpack.c.l.s4 1983009808
          %v392 = vunpack.c.0.s8 %v391
          %v393 = vlaneseq
          %v394 = vshrl.u32 %v393, 7
          %v395 = vsub.s32 %v392, %v394
          %v396 = vrot.slane %v388, %v395
          %v398 = vunpack.c.l.s4 1983009808
          %v399 = vunpack.c.0.s8 %v398
          %v400 = vlaneseq
          %v401 = vshrl.u32 %v400, 7
          %v402 = vsub.s32 %v399, %v401
          %v403 = vrot.slane %v389, %v402
          %v404 = vcombine.low %v205, %v217
          %v405 = vcombine.high %v205, %v217
          %v407 = vunpack.c.l.s4 1983009808
          %v408 = vunpack.c.0.s8 %v407
          %v409 = vlaneseq
          %v410 = vshrl.u32 %v409, 7
          %v411 = vsub.s32 %v408, %v410
          %v412 = vrot.slane %v404, %v411
          %v414 = vunpack.c.l.s4 1983009808
          %v415 = vunpack.c.0.s8 %v414
          %v416 = vlaneseq
          %v417 = vshrl.u32 %v416, 7
          %v418 = vsub.s32 %v415, %v417
          %v419 = vrot.slane %v405, %v418
          %v420 = vcombine.low %v364, %v380
          %v421 = vcombine.high %v364, %v380
          %v423 = vunpack.c.l.s4 1934713408
          %v424 = vunpack.c.0.s8 %v423
          %v425 = vlaneseq
          %v426 = vshrl.u32 %v425, 7
          %v427 = vsub.s32 %v424, %v426
          %v428 = vrot.slane %v420, %v427
          %v430 = vunpack.c.l.s4 1934713408
          %v431 = vunpack.c.0.s8 %v430
          %v432 = vlaneseq
          %v433 = vshrl.u32 %v432, 7
          %v434 = vsub.s32 %v431, %v433
          %v435 = vrot.slane %v421, %v434
          %v436 = vcombine.low %v371, %v387
          %v437 = vcombine.high %v371, %v387
          %v439 = vunpack.c.l.s4 1934713408
          %v440 = vunpack.c.0.s8 %v439
          %v441 = vlaneseq
          %v442 = vshrl.u32 %v441, 7
          %v443 = vsub.s32 %v440, %v442
          %v444 = vrot.slane %v436, %v443
          %v446 = vunpack.c.l.s4 1934713408
          %v447 = vunpack.c.0.s8 %v446
          %v448 = vlaneseq
          %v449 = vshrl.u32 %v448, 7
          %v450 = vsub.s32 %v447, %v449
          %v451 = vrot.slane %v437, %v450
          %v452 = vcombine.low %v396, %v412
          %v453 = vcombine.high %v396, %v412
          %v455 = vunpack.c.l.s4 1934713408
          %v456 = vunpack.c.0.s8 %v455
          %v457 = vlaneseq
          %v458 = vshrl.u32 %v457, 7
          %v459 = vsub.s32 %v456, %v458
          %v460 = vrot.slane %v452, %v459
          %v462 = vunpack.c.l.s4 1934713408
          %v463 = vunpack.c.0.s8 %v462
          %v464 = vlaneseq
          %v465 = vshrl.u32 %v464, 7
          %v466 = vsub.s32 %v463, %v465
          %v467 = vrot.slane %v453, %v466
          %v468 = vcombine.low %v403, %v419
          %v469 = vcombine.high %v403, %v419
          %v471 = vunpack.c.l.s4 1934713408
          %v472 = vunpack.c.0.s8 %v471
          %v473 = vlaneseq
          %v474 = vshrl.u32 %v473, 7
          %v475 = vsub.s32 %v472, %v474
          %v476 = vrot.slane %v468, %v475
          %v478 = vunpack.c.l.s4 1934713408
          %v479 = vunpack.c.0.s8 %v478
          %v480 = vlaneseq
          %v481 = vshrl.u32 %v480, 7
          %v482 = vsub.s32 %v479, %v481
          %v483 = vrot.slane %v469, %v482
          %v484 = vcombine.low %v428, %v460
          %v485 = vcombine.high %v428, %v460
          %v486 = vcombine.low %v435, %v467
          %v487 = vcombine.high %v435, %v467
          %v488 = vcombine.low %v444, %v476
          %v489 = vcombine.high %v444, %v476
          %v490 = vcombine.low %v451, %v483
          %v491 = vcombine.high %v451, %v483
          %492 = vxpose.xlu0.b32.start [1/16] %v348, 128
          %493 = vxpose.xlu0.b32.cont [2/16] 0.0, 128
          %494 = vxpose.xlu0.b32.cont [3/16] 0.0, 128
          %495 = vxpose.xlu0.b32.cont [4/16] 0.0, 128
          %496 = vxpose.xlu0.b32.cont [5/16] 0.0, 128
          %497 = vxpose.xlu0.b32.cont [6/16] 0.0, 128
          %498 = vxpose.xlu0.b32.cont [7/16] 0.0, 128
          %499 = vxpose.xlu0.b32.cont [8/16] 0.0, 128
          %500 = vxpose.xlu0.b32.cont [9/16] 0.0, 128
          %501 = vxpose.xlu0.b32.cont [10/16] 0.0, 128
          %502 = vxpose.xlu0.b32.cont [11/16] 0.0, 128
          %503 = vxpose.xlu0.b32.cont [12/16] 0.0, 128
          %504 = vxpose.xlu0.b32.cont [13/16] 0.0, 128
          %505 = vxpose.xlu0.b32.cont [14/16] 0.0, 128
          %506 = vxpose.xlu0.b32.cont [15/16] 0.0, 128
          %507 = vxpose.xlu0.b32.end [16/16] 0.0, 128
          %v508 = vpop.trf.xlu0
          %v509 = vpop.trf.xlu0
          %v510 = vpop.trf.xlu0
          %v511 = vpop.trf.xlu0
          %v512 = vpop.trf.xlu0
          %v513 = vpop.trf.xlu0
          %v514 = vpop.trf.xlu0
          %v515 = vpop.trf.xlu0
          %v516 = vpop.trf.xlu0
          %v517 = vpop.trf.xlu0
          %v518 = vpop.trf.xlu0
          %v519 = vpop.trf.xlu0
          %v520 = vpop.trf.xlu0
          %v521 = vpop.trf.xlu0
          %v522 = vpop.trf.xlu0
          %v523 = vpop.trf.xlu0
          %524 = vxpose.xlu0.b32.start [1/16] %v349, 128
          %525 = vxpose.xlu0.b32.cont [2/16] 0.0, 128
          %526 = vxpose.xlu0.b32.cont [3/16] 0.0, 128
          %527 = vxpose.xlu0.b32.cont [4/16] 0.0, 128
          %528 = vxpose.xlu0.b32.cont [5/16] 0.0, 128
          %529 = vxpose.xlu0.b32.cont [6/16] 0.0, 128
          %530 = vxpose.xlu0.b32.cont [7/16] 0.0, 128
          %531 = vxpose.xlu0.b32.cont [8/16] 0.0, 128
          %532 = vxpose.xlu0.b32.cont [9/16] 0.0, 128
          %533 = vxpose.xlu0.b32.cont [10/16] 0.0, 128
          %534 = vxpose.xlu0.b32.cont [11/16] 0.0, 128
          %535 = vxpose.xlu0.b32.cont [12/16] 0.0, 128
          %536 = vxpose.xlu0.b32.cont [13/16] 0.0, 128
          %537 = vxpose.xlu0.b32.cont [14/16] 0.0, 128
          %538 = vxpose.xlu0.b32.cont [15/16] 0.0, 128
          %539 = vxpose.xlu0.b32.end [16/16] 0.0, 128
          %v540 = vpop.trf.xlu0
          %v541 = vpop.trf.xlu0
          %v542 = vpop.trf.xlu0
          %v543 = vpop.trf.xlu0
          %v544 = vpop.trf.xlu0
          %v545 = vpop.trf.xlu0
          %v546 = vpop.trf.xlu0
          %v547 = vpop.trf.xlu0
          %v548 = vpop.trf.xlu0
          %v549 = vpop.trf.xlu0
          %v550 = vpop.trf.xlu0
          %v551 = vpop.trf.xlu0
          %v552 = vpop.trf.xlu0
          %v553 = vpop.trf.xlu0
          %v554 = vpop.trf.xlu0
          %v555 = vpop.trf.xlu0
          %556 = vxpose.xlu0.b32.start [1/16] %v350, 128
          %557 = vxpose.xlu0.b32.cont [2/16] 0.0, 128
          %558 = vxpose.xlu0.b32.cont [3/16] 0.0, 128
          %559 = vxpose.xlu0.b32.cont [4/16] 0.0, 128
          %560 = vxpose.xlu0.b32.cont [5/16] 0.0, 128
          %561 = vxpose.xlu0.b32.cont [6/16] 0.0, 128
          %562 = vxpose.xlu0.b32.cont [7/16] 0.0, 128
          %563 = vxpose.xlu0.b32.cont [8/16] 0.0, 128
          %564 = vxpose.xlu0.b32.cont [9/16] 0.0, 128
          %565 = vxpose.xlu0.b32.cont [10/16] 0.0, 128
          %566 = vxpose.xlu0.b32.cont [11/16] 0.0, 128
          %567 = vxpose.xlu0.b32.cont [12/16] 0.0, 128
          %568 = vxpose.xlu0.b32.cont [13/16] 0.0, 128
          %569 = vxpose.xlu0.b32.cont [14/16] 0.0, 128
          %570 = vxpose.xlu0.b32.cont [15/16] 0.0, 128
          %571 = vxpose.xlu0.b32.end [16/16] 0.0, 128
          %v572 = vpop.trf.xlu0
          %v573 = vpop.trf.xlu0
          %v574 = vpop.trf.xlu0
          %v575 = vpop.trf.xlu0
          %v576 = vpop.trf.xlu0
          %v577 = vpop.trf.xlu0
          %v578 = vpop.trf.xlu0
          %v579 = vpop.trf.xlu0
          %v580 = vpop.trf.xlu0
          %v581 = vpop.trf.xlu0
          %v582 = vpop.trf.xlu0
          %v583 = vpop.trf.xlu0
          %v584 = vpop.trf.xlu0
          %v585 = vpop.trf.xlu0
          %v586 = vpop.trf.xlu0
          %v587 = vpop.trf.xlu0
          %588 = vxpose.xlu0.b32.start [1/16] %v351, 128
          %589 = vxpose.xlu0.b32.cont [2/16] 0.0, 128
          %590 = vxpose.xlu0.b32.cont [3/16] 0.0, 128
          %591 = vxpose.xlu0.b32.cont [4/16] 0.0, 128
          %592 = vxpose.xlu0.b32.cont [5/16] 0.0, 128
          %593 = vxpose.xlu0.b32.cont [6/16] 0.0, 128
          %594 = vxpose.xlu0.b32.cont [7/16] 0.0, 128
          %595 = vxpose.xlu0.b32.cont [8/16] 0.0, 128
          %596 = vxpose.xlu0.b32.cont [9/16] 0.0, 128
          %597 = vxpose.xlu0.b32.cont [10/16] 0.0, 128
          %598 = vxpose.xlu0.b32.cont [11/16] 0.0, 128
          %599 = vxpose.xlu0.b32.cont [12/16] 0.0, 128
          %600 = vxpose.xlu0.b32.cont [13/16] 0.0, 128
          %601 = vxpose.xlu0.b32.cont [14/16] 0.0, 128
          %602 = vxpose.xlu0.b32.cont [15/16] 0.0, 128
          %603 = vxpose.xlu0.b32.end [16/16] 0.0, 128
          %v604 = vpop.trf.xlu0
          %v605 = vpop.trf.xlu0
          %v606 = vpop.trf.xlu0
          %v607 = vpop.trf.xlu0
          %v608 = vpop.trf.xlu0
          %v609 = vpop.trf.xlu0
          %v610 = vpop.trf.xlu0
          %v611 = vpop.trf.xlu0
          %v612 = vpop.trf.xlu0
          %v613 = vpop.trf.xlu0
          %v614 = vpop.trf.xlu0
          %v615 = vpop.trf.xlu0
          %v616 = vpop.trf.xlu0
          %v617 = vpop.trf.xlu0
          %v618 = vpop.trf.xlu0
          %v619 = vpop.trf.xlu0
          %620 = vxpose.xlu0.b32.start [1/16] %v352, 128
          %621 = vxpose.xlu0.b32.cont [2/16] 0.0, 128
          %622 = vxpose.xlu0.b32.cont [3/16] 0.0, 128
          %623 = vxpose.xlu0.b32.cont [4/16] 0.0, 128
          %624 = vxpose.xlu0.b32.cont [5/16] 0.0, 128
          %625 = vxpose.xlu0.b32.cont [6/16] 0.0, 128
          %626 = vxpose.xlu0.b32.cont [7/16] 0.0, 128
          %627 = vxpose.xlu0.b32.cont [8/16] 0.0, 128
          %628 = vxpose.xlu0.b32.cont [9/16] 0.0, 128
          %629 = vxpose.xlu0.b32.cont [10/16] 0.0, 128
          %630 = vxpose.xlu0.b32.cont [11/16] 0.0, 128
          %631 = vxpose.xlu0.b32.cont [12/16] 0.0, 128
          %632 = vxpose.xlu0.b32.cont [13/16] 0.0, 128
          %633 = vxpose.xlu0.b32.cont [14/16] 0.0, 128
          %634 = vxpose.xlu0.b32.cont [15/16] 0.0, 128
          %635 = vxpose.xlu0.b32.end [16/16] 0.0, 128
          %v636 = vpop.trf.xlu0
          %v637 = vpop.trf.xlu0
          %v638 = vpop.trf.xlu0
          %v639 = vpop.trf.xlu0
          %v640 = vpop.trf.xlu0
          %v641 = vpop.trf.xlu0
          %v642 = vpop.trf.xlu0
          %v643 = vpop.trf.xlu0
          %v644 = vpop.trf.xlu0
          %v645 = vpop.trf.xlu0
          %v646 = vpop.trf.xlu0
          %v647 = vpop.trf.xlu0
          %v648 = vpop.trf.xlu0
          %v649 = vpop.trf.xlu0
          %v650 = vpop.trf.xlu0
          %v651 = vpop.trf.xlu0
          %652 = vxpose.xlu0.b32.start [1/16] %v353, 128
          %653 = vxpose.xlu0.b32.cont [2/16] 0.0, 128
          %654 = vxpose.xlu0.b32.cont [3/16] 0.0, 128
          %655 = vxpose.xlu0.b32.cont [4/16] 0.0, 128
          %656 = vxpose.xlu0.b32.cont [5/16] 0.0, 128
          %657 = vxpose.xlu0.b32.cont [6/16] 0.0, 128
          %658 = vxpose.xlu0.b32.cont [7/16] 0.0, 128
          %659 = vxpose.xlu0.b32.cont [8/16] 0.0, 128
          %660 = vxpose.xlu0.b32.cont [9/16] 0.0, 128
          %661 = vxpose.xlu0.b32.cont [10/16] 0.0, 128
          %662 = vxpose.xlu0.b32.cont [11/16] 0.0, 128
          %663 = vxpose.xlu0.b32.cont [12/16] 0.0, 128
          %664 = vxpose.xlu0.b32.cont [13/16] 0.0, 128
          %665 = vxpose.xlu0.b32.cont [14/16] 0.0, 128
          %666 = vxpose.xlu0.b32.cont [15/16] 0.0, 128
          %667 = vxpose.xlu0.b32.end [16/16] 0.0, 128
          %v668 = vpop.trf.xlu0
          %v669 = vpop.trf.xlu0
          %v670 = vpop.trf.xlu0
          %v671 = vpop.trf.xlu0
          %v672 = vpop.trf.xlu0
          %v673 = vpop.trf.xlu0
          %v674 = vpop.trf.xlu0
          %v675 = vpop.trf.xlu0
          %v676 = vpop.trf.xlu0
          %v677 = vpop.trf.xlu0
          %v678 = vpop.trf.xlu0
          %v679 = vpop.trf.xlu0
          %v680 = vpop.trf.xlu0
          %v681 = vpop.trf.xlu0
          %v682 = vpop.trf.xlu0
          %v683 = vpop.trf.xlu0
          %684 = vxpose.xlu0.b32.start [1/16] %v354, 128
          %685 = vxpose.xlu0.b32.cont [2/16] 0.0, 128
          %686 = vxpose.xlu0.b32.cont [3/16] 0.0, 128
          %687 = vxpose.xlu0.b32.cont [4/16] 0.0, 128
          %688 = vxpose.xlu0.b32.cont [5/16] 0.0, 128
          %689 = vxpose.xlu0.b32.cont [6/16] 0.0, 128
          %690 = vxpose.xlu0.b32.cont [7/16] 0.0, 128
          %691 = vxpose.xlu0.b32.cont [8/16] 0.0, 128
          %692 = vxpose.xlu0.b32.cont [9/16] 0.0, 128
          %693 = vxpose.xlu0.b32.cont [10/16] 0.0, 128
          %694 = vxpose.xlu0.b32.cont [11/16] 0.0, 128
          %695 = vxpose.xlu0.b32.cont [12/16] 0.0, 128
          %696 = vxpose.xlu0.b32.cont [13/16] 0.0, 128
          %697 = vxpose.xlu0.b32.cont [14/16] 0.0, 128
          %698 = vxpose.xlu0.b32.cont [15/16] 0.0, 128
          %699 = vxpose.xlu0.b32.end [16/16] 0.0, 128
          %v700 = vpop.trf.xlu0
          %v701 = vpop.trf.xlu0
          %v702 = vpop.trf.xlu0
          %v703 = vpop.trf.xlu0
          %v704 = vpop.trf.xlu0
          %v705 = vpop.trf.xlu0
          %v706 = vpop.trf.xlu0
          %v707 = vpop.trf.xlu0
          %v708 = vpop.trf.xlu0
          %v709 = vpop.trf.xlu0
          %v710 = vpop.trf.xlu0
          %v711 = vpop.trf.xlu0
          %v712 = vpop.trf.xlu0
          %v713 = vpop.trf.xlu0
          %v714 = vpop.trf.xlu0
          %v715 = vpop.trf.xlu0
          %716 = vxpose.xlu0.b32.start [1/16] %v355, 128
          %717 = vxpose.xlu0.b32.cont [2/16] 0.0, 128
          %718 = vxpose.xlu0.b32.cont [3/16] 0.0, 128
          %719 = vxpose.xlu0.b32.cont [4/16] 0.0, 128
          %720 = vxpose.xlu0.b32.cont [5/16] 0.0, 128
          %721 = vxpose.xlu0.b32.cont [6/16] 0.0, 128
          %722 = vxpose.xlu0.b32.cont [7/16] 0.0, 128
          %723 = vxpose.xlu0.b32.cont [8/16] 0.0, 128
          %724 = vxpose.xlu0.b32.cont [9/16] 0.0, 128
          %725 = vxpose.xlu0.b32.cont [10/16] 0.0, 128
          %726 = vxpose.xlu0.b32.cont [11/16] 0.0, 128
          %727 = vxpose.xlu0.b32.cont [12/16] 0.0, 128
          %728 = vxpose.xlu0.b32.cont [13/16] 0.0, 128
          %729 = vxpose.xlu0.b32.cont [14/16] 0.0, 128
          %730 = vxpose.xlu0.b32.cont [15/16] 0.0, 128
          %731 = vxpose.xlu0.b32.end [16/16] 0.0, 128
          %v732 = vpop.trf.xlu0
          %v733 = vpop.trf.xlu0
          %v734 = vpop.trf.xlu0
          %v735 = vpop.trf.xlu0
          %v736 = vpop.trf.xlu0
          %v737 = vpop.trf.xlu0
          %v738 = vpop.trf.xlu0
          %v739 = vpop.trf.xlu0
          %v740 = vpop.trf.xlu0
          %v741 = vpop.trf.xlu0
          %v742 = vpop.trf.xlu0
          %v743 = vpop.trf.xlu0
          %v744 = vpop.trf.xlu0
          %v745 = vpop.trf.xlu0
          %v746 = vpop.trf.xlu0
          %v747 = vpop.trf.xlu0
          %748 = vxpose.xlu0.b32.start [1/16] %v484, 128
          %749 = vxpose.xlu0.b32.cont [2/16] 0.0, 128
          %750 = vxpose.xlu0.b32.cont [3/16] 0.0, 128
          %751 = vxpose.xlu0.b32.cont [4/16] 0.0, 128
          %752 = vxpose.xlu0.b32.cont [5/16] 0.0, 128
          %753 = vxpose.xlu0.b32.cont [6/16] 0.0, 128
          %754 = vxpose.xlu0.b32.cont [7/16] 0.0, 128
          %755 = vxpose.xlu0.b32.cont [8/16] 0.0, 128
          %756 = vxpose.xlu0.b32.cont [9/16] 0.0, 128
          %757 = vxpose.xlu0.b32.cont [10/16] 0.0, 128
          %758 = vxpose.xlu0.b32.cont [11/16] 0.0, 128
          %759 = vxpose.xlu0.b32.cont [12/16] 0.0, 128
          %760 = vxpose.xlu0.b32.cont [13/16] 0.0, 128
          %761 = vxpose.xlu0.b32.cont [14/16] 0.0, 128
          %762 = vxpose.xlu0.b32.cont [15/16] 0.0, 128
          %763 = vxpose.xlu0.b32.end [16/16] 0.0, 128
          %v764 = vpop.trf.xlu0
          %v765 = vpop.trf.xlu0
          %v766 = vpop.trf.xlu0
          %v767 = vpop.trf.xlu0
          %v768 = vpop.trf.xlu0
          %v769 = vpop.trf.xlu0
          %v770 = vpop.trf.xlu0
          %v771 = vpop.trf.xlu0
          %v772 = vpop.trf.xlu0
          %v773 = vpop.trf.xlu0
          %v774 = vpop.trf.xlu0
          %v775 = vpop.trf.xlu0
          %v776 = vpop.trf.xlu0
          %v777 = vpop.trf.xlu0
          %v778 = vpop.trf.xlu0
          %v779 = vpop.trf.xlu0
          %780 = vxpose.xlu0.b32.start [1/16] %v485, 128
          %781 = vxpose.xlu0.b32.cont [2/16] 0.0, 128
          %782 = vxpose.xlu0.b32.cont [3/16] 0.0, 128
          %783 = vxpose.xlu0.b32.cont [4/16] 0.0, 128
          %784 = vxpose.xlu0.b32.cont [5/16] 0.0, 128
          %785 = vxpose.xlu0.b32.cont [6/16] 0.0, 128
          %786 = vxpose.xlu0.b32.cont [7/16] 0.0, 128
          %787 = vxpose.xlu0.b32.cont [8/16] 0.0, 128
          %788 = vxpose.xlu0.b32.cont [9/16] 0.0, 128
          %789 = vxpose.xlu0.b32.cont [10/16] 0.0, 128
          %790 = vxpose.xlu0.b32.cont [11/16] 0.0, 128
          %791 = vxpose.xlu0.b32.cont [12/16] 0.0, 128
          %792 = vxpose.xlu0.b32.cont [13/16] 0.0, 128
          %793 = vxpose.xlu0.b32.cont [14/16] 0.0, 128
          %794 = vxpose.xlu0.b32.cont [15/16] 0.0, 128
          %795 = vxpose.xlu0.b32.end [16/16] 0.0, 128
          %v796 = vpop.trf.xlu0
          %v797 = vpop.trf.xlu0
          %v798 = vpop.trf.xlu0
          %v799 = vpop.trf.xlu0
          %v800 = vpop.trf.xlu0
          %v801 = vpop.trf.xlu0
          %v802 = vpop.trf.xlu0
          %v803 = vpop.trf.xlu0
          %v804 = vpop.trf.xlu0
          %v805 = vpop.trf.xlu0
          %v806 = vpop.trf.xlu0
          %v807 = vpop.trf.xlu0
          %v808 = vpop.trf.xlu0
          %v809 = vpop.trf.xlu0
          %v810 = vpop.trf.xlu0
          %v811 = vpop.trf.xlu0
          %812 = vxpose.xlu0.b32.start [1/16] %v486, 128
          %813 = vxpose.xlu0.b32.cont [2/16] 0.0, 128
          %814 = vxpose.xlu0.b32.cont [3/16] 0.0, 128
          %815 = vxpose.xlu0.b32.cont [4/16] 0.0, 128
          %816 = vxpose.xlu0.b32.cont [5/16] 0.0, 128
          %817 = vxpose.xlu0.b32.cont [6/16] 0.0, 128
          %818 = vxpose.xlu0.b32.cont [7/16] 0.0, 128
          %819 = vxpose.xlu0.b32.cont [8/16] 0.0, 128
          %820 = vxpose.xlu0.b32.cont [9/16] 0.0, 128
          %821 = vxpose.xlu0.b32.cont [10/16] 0.0, 128
          %822 = vxpose.xlu0.b32.cont [11/16] 0.0, 128
          %823 = vxpose.xlu0.b32.cont [12/16] 0.0, 128
          %824 = vxpose.xlu0.b32.cont [13/16] 0.0, 128
          %825 = vxpose.xlu0.b32.cont [14/16] 0.0, 128
          %826 = vxpose.xlu0.b32.cont [15/16] 0.0, 128
          %827 = vxpose.xlu0.b32.end [16/16] 0.0, 128
          %v828 = vpop.trf.xlu0
          %v829 = vpop.trf.xlu0
          %v830 = vpop.trf.xlu0
          %v831 = vpop.trf.xlu0
          %v832 = vpop.trf.xlu0
          %v833 = vpop.trf.xlu0
          %v834 = vpop.trf.xlu0
          %v835 = vpop.trf.xlu0
          %v836 = vpop.trf.xlu0
          %v837 = vpop.trf.xlu0
          %v838 = vpop.trf.xlu0
          %v839 = vpop.trf.xlu0
          %v840 = vpop.trf.xlu0
          %v841 = vpop.trf.xlu0
          %v842 = vpop.trf.xlu0
          %v843 = vpop.trf.xlu0
          %844 = vxpose.xlu0.b32.start [1/16] %v487, 128
          %845 = vxpose.xlu0.b32.cont [2/16] 0.0, 128
          %846 = vxpose.xlu0.b32.cont [3/16] 0.0, 128
          %847 = vxpose.xlu0.b32.cont [4/16] 0.0, 128
          %848 = vxpose.xlu0.b32.cont [5/16] 0.0, 128
          %849 = vxpose.xlu0.b32.cont [6/16] 0.0, 128
          %850 = vxpose.xlu0.b32.cont [7/16] 0.0, 128
          %851 = vxpose.xlu0.b32.cont [8/16] 0.0, 128
          %852 = vxpose.xlu0.b32.cont [9/16] 0.0, 128
          %853 = vxpose.xlu0.b32.cont [10/16] 0.0, 128
          %854 = vxpose.xlu0.b32.cont [11/16] 0.0, 128
          %855 = vxpose.xlu0.b32.cont [12/16] 0.0, 128
          %856 = vxpose.xlu0.b32.cont [13/16] 0.0, 128
          %857 = vxpose.xlu0.b32.cont [14/16] 0.0, 128
          %858 = vxpose.xlu0.b32.cont [15/16] 0.0, 128
          %859 = vxpose.xlu0.b32.end [16/16] 0.0, 128
          %v860 = vpop.trf.xlu0
          %v861 = vpop.trf.xlu0
          %v862 = vpop.trf.xlu0
          %v863 = vpop.trf.xlu0
          %v864 = vpop.trf.xlu0
          %v865 = vpop.trf.xlu0
          %v866 = vpop.trf.xlu0
          %v867 = vpop.trf.xlu0
          %v868 = vpop.trf.xlu0
          %v869 = vpop.trf.xlu0
          %v870 = vpop.trf.xlu0
          %v871 = vpop.trf.xlu0
          %v872 = vpop.trf.xlu0
          %v873 = vpop.trf.xlu0
          %v874 = vpop.trf.xlu0
          %v875 = vpop.trf.xlu0
          %876 = vxpose.xlu0.b32.start [1/16] %v488, 128
          %877 = vxpose.xlu0.b32.cont [2/16] 0.0, 128
          %878 = vxpose.xlu0.b32.cont [3/16] 0.0, 128
          %879 = vxpose.xlu0.b32.cont [4/16] 0.0, 128
          %880 = vxpose.xlu0.b32.cont [5/16] 0.0, 128
          %881 = vxpose.xlu0.b32.cont [6/16] 0.0, 128
          %882 = vxpose.xlu0.b32.cont [7/16] 0.0, 128
          %883 = vxpose.xlu0.b32.cont [8/16] 0.0, 128
          %884 = vxpose.xlu0.b32.cont [9/16] 0.0, 128
          %885 = vxpose.xlu0.b32.cont [10/16] 0.0, 128
          %886 = vxpose.xlu0.b32.cont [11/16] 0.0, 128
          %887 = vxpose.xlu0.b32.cont [12/16] 0.0, 128
          %888 = vxpose.xlu0.b32.cont [13/16] 0.0, 128
          %889 = vxpose.xlu0.b32.cont [14/16] 0.0, 128
          %890 = vxpose.xlu0.b32.cont [15/16] 0.0, 128
          %891 = vxpose.xlu0.b32.end [16/16] 0.0, 128
          %v892 = vpop.trf.xlu0
          %v893 = vpop.trf.xlu0
          %v894 = vpop.trf.xlu0
          %v895 = vpop.trf.xlu0
          %v896 = vpop.trf.xlu0
          %v897 = vpop.trf.xlu0
          %v898 = vpop.trf.xlu0
          %v899 = vpop.trf.xlu0
          %v900 = vpop.trf.xlu0
          %v901 = vpop.trf.xlu0
          %v902 = vpop.trf.xlu0
          %v903 = vpop.trf.xlu0
          %v904 = vpop.trf.xlu0
          %v905 = vpop.trf.xlu0
          %v906 = vpop.trf.xlu0
          %v907 = vpop.trf.xlu0
          %908 = vxpose.xlu0.b32.start [1/16] %v489, 128
          %909 = vxpose.xlu0.b32.cont [2/16] 0.0, 128
          %910 = vxpose.xlu0.b32.cont [3/16] 0.0, 128
          %911 = vxpose.xlu0.b32.cont [4/16] 0.0, 128
          %912 = vxpose.xlu0.b32.cont [5/16] 0.0, 128
          %913 = vxpose.xlu0.b32.cont [6/16] 0.0, 128
          %914 = vxpose.xlu0.b32.cont [7/16] 0.0, 128
          %915 = vxpose.xlu0.b32.cont [8/16] 0.0, 128
          %916 = vxpose.xlu0.b32.cont [9/16] 0.0, 128
          %917 = vxpose.xlu0.b32.cont [10/16] 0.0, 128
          %918 = vxpose.xlu0.b32.cont [11/16] 0.0, 128
          %919 = vxpose.xlu0.b32.cont [12/16] 0.0, 128
          %920 = vxpose.xlu0.b32.cont [13/16] 0.0, 128
          %921 = vxpose.xlu0.b32.cont [14/16] 0.0, 128
          %922 = vxpose.xlu0.b32.cont [15/16] 0.0, 128
          %923 = vxpose.xlu0.b32.end [16/16] 0.0, 128
          %v924 = vpop.trf.xlu0
          %v925 = vpop.trf.xlu0
          %v926 = vpop.trf.xlu0
          %v927 = vpop.trf.xlu0
          %v928 = vpop.trf.xlu0
          %v929 = vpop.trf.xlu0
          %v930 = vpop.trf.xlu0
          %v931 = vpop.trf.xlu0
          %v932 = vpop.trf.xlu0
          %v933 = vpop.trf.xlu0
          %v934 = vpop.trf.xlu0
          %v935 = vpop.trf.xlu0
          %v936 = vpop.trf.xlu0
          %v937 = vpop.trf.xlu0
          %v938 = vpop.trf.xlu0
          %v939 = vpop.trf.xlu0
          %940 = vxpose.xlu0.b32.start [1/16] %v490, 128
          %941 = vxpose.xlu0.b32.cont [2/16] 0.0, 128
          %942 = vxpose.xlu0.b32.cont [3/16] 0.0, 128
          %943 = vxpose.xlu0.b32.cont [4/16] 0.0, 128
          %944 = vxpose.xlu0.b32.cont [5/16] 0.0, 128
          %945 = vxpose.xlu0.b32.cont [6/16] 0.0, 128
          %946 = vxpose.xlu0.b32.cont [7/16] 0.0, 128
          %947 = vxpose.xlu0.b32.cont [8/16] 0.0, 128
          %948 = vxpose.xlu0.b32.cont [9/16] 0.0, 128
          %949 = vxpose.xlu0.b32.cont [10/16] 0.0, 128
          %950 = vxpose.xlu0.b32.cont [11/16] 0.0, 128
          %951 = vxpose.xlu0.b32.cont [12/16] 0.0, 128
          %952 = vxpose.xlu0.b32.cont [13/16] 0.0, 128
          %953 = vxpose.xlu0.b32.cont [14/16] 0.0, 128
          %954 = vxpose.xlu0.b32.cont [15/16] 0.0, 128
          %955 = vxpose.xlu0.b32.end [16/16] 0.0, 128
          %v956 = vpop.trf.xlu0
          %v957 = vpop.trf.xlu0
          %v958 = vpop.trf.xlu0
          %v959 = vpop.trf.xlu0
          %v960 = vpop.trf.xlu0
          %v961 = vpop.trf.xlu0
          %v962 = vpop.trf.xlu0
          %v963 = vpop.trf.xlu0
          %v964 = vpop.trf.xlu0
          %v965 = vpop.trf.xlu0
          %v966 = vpop.trf.xlu0
          %v967 = vpop.trf.xlu0
          %v968 = vpop.trf.xlu0
          %v969 = vpop.trf.xlu0
          %v970 = vpop.trf.xlu0
          %v971 = vpop.trf.xlu0
          %972 = vxpose.xlu0.b32.start [1/16] %v491, 128
          %973 = vxpose.xlu0.b32.cont [2/16] 0.0, 128
          %974 = vxpose.xlu0.b32.cont [3/16] 0.0, 128
          %975 = vxpose.xlu0.b32.cont [4/16] 0.0, 128
          %976 = vxpose.xlu0.b32.cont [5/16] 0.0, 128
          %977 = vxpose.xlu0.b32.cont [6/16] 0.0, 128
          %978 = vxpose.xlu0.b32.cont [7/16] 0.0, 128
          %979 = vxpose.xlu0.b32.cont [8/16] 0.0, 128
          %980 = vxpose.xlu0.b32.cont [9/16] 0.0, 128
          %981 = vxpose.xlu0.b32.cont [10/16] 0.0, 128
          %982 = vxpose.xlu0.b32.cont [11/16] 0.0, 128
          %983 = vxpose.xlu0.b32.cont [12/16] 0.0, 128
          %984 = vxpose.xlu0.b32.cont [13/16] 0.0, 128
          %985 = vxpose.xlu0.b32.cont [14/16] 0.0, 128
          %986 = vxpose.xlu0.b32.cont [15/16] 0.0, 128
          %987 = vxpose.xlu0.b32.end [16/16] 0.0, 128
          %v988 = vpop.trf.xlu0
          %v989 = vpop.trf.xlu0
          %v990 = vpop.trf.xlu0
          %v991 = vpop.trf.xlu0
          %v992 = vpop.trf.xlu0
          %v993 = vpop.trf.xlu0
          %v994 = vpop.trf.xlu0
          %v995 = vpop.trf.xlu0
          %v996 = vpop.trf.xlu0
          %v997 = vpop.trf.xlu0
          %v998 = vpop.trf.xlu0
          %v999 = vpop.trf.xlu0
          %v1000 = vpop.trf.xlu0
          %v1001 = vpop.trf.xlu0
          %v1002 = vpop.trf.xlu0
          %v1003 = vpop.trf.xlu0
          %v1004 = vcombine.low %v508, %v636
          %v1006 = vunpack.c.l.s4 1983009808
          %v1007 = vunpack.c.0.s8 %v1006
          %v1008 = vlaneseq
          %v1009 = vshrl.u32 %v1008, 7
          %v1010 = vsub.s32 %v1007, %v1009
          %v1011 = vrot.slane %v1004, %v1010
          %v1012 = vcombine.low %v572, %v700
          %v1014 = vunpack.c.l.s4 1983009808
          %v1015 = vunpack.c.0.s8 %v1014
          %v1016 = vlaneseq
          %v1017 = vshrl.u32 %v1016, 7
          %v1018 = vsub.s32 %v1015, %v1017
          %v1019 = vrot.slane %v1012, %v1018
          %v1020 = vcombine.low %v764, %v892
          %v1022 = vunpack.c.l.s4 1983009808
          %v1023 = vunpack.c.0.s8 %v1022
          %v1024 = vlaneseq
          %v1025 = vshrl.u32 %v1024, 7
          %v1026 = vsub.s32 %v1023, %v1025
          %v1027 = vrot.slane %v1020, %v1026
          %v1028 = vcombine.low %v828, %v956
          %v1030 = vunpack.c.l.s4 1983009808
          %v1031 = vunpack.c.0.s8 %v1030
          %v1032 = vlaneseq
          %v1033 = vshrl.u32 %v1032, 7
          %v1034 = vsub.s32 %v1031, %v1033
          %v1035 = vrot.slane %v1028, %v1034
          %v1036 = vcombine.low %v1011, %v1019
          %v1038 = vunpack.c.l.s4 1934713408
          %v1039 = vunpack.c.0.s8 %v1038
          %v1040 = vlaneseq
          %v1041 = vshrl.u32 %v1040, 7
          %v1042 = vsub.s32 %v1039, %v1041
          %v1043 = vrot.slane %v1036, %v1042
          %v1044 = vcombine.low %v1027, %v1035
          %v1046 = vunpack.c.l.s4 1934713408
          %v1047 = vunpack.c.0.s8 %v1046
          %v1048 = vlaneseq
          %v1049 = vshrl.u32 %v1048, 7
          %v1050 = vsub.s32 %v1047, %v1049
          %v1051 = vrot.slane %v1044, %v1050
          %v1052 = vcombine.low %v1043, %v1051
          %v1053 = vcombine.high %v1043, %v1051
          %v1054 = vcombine.low %v540, %v668
          %v1056 = vunpack.c.l.s4 1983009808
          %v1057 = vunpack.c.0.s8 %v1056
          %v1058 = vlaneseq
          %v1059 = vshrl.u32 %v1058, 7
          %v1060 = vsub.s32 %v1057, %v1059
          %v1061 = vrot.slane %v1054, %v1060
          %v1062 = vcombine.low %v604, %v732
          %v1064 = vunpack.c.l.s4 1983009808
          %v1065 = vunpack.c.0.s8 %v1064
          %v1066 = vlaneseq
          %v1067 = vshrl.u32 %v1066, 7
          %v1068 = vsub.s32 %v1065, %v1067
          %v1069 = vrot.slane %v1062, %v1068
          %v1070 = vcombine.low %v796, %v924
          %v1072 = vunpack.c.l.s4 1983009808
          %v1073 = vunpack.c.0.s8 %v1072
          %v1074 = vlaneseq
          %v1075 = vshrl.u32 %v1074, 7
          %v1076 = vsub.s32 %v1073, %v1075
          %v1077 = vrot.slane %v1070, %v1076
          %v1078 = vcombine.low %v860, %v988
          %v1080 = vunpack.c.l.s4 1983009808
          %v1081 = vunpack.c.0.s8 %v1080
          %v1082 = vlaneseq
          %v1083 = vshrl.u32 %v1082, 7
          %v1084 = vsub.s32 %v1081, %v1083
          %v1085 = vrot.slane %v1078, %v1084
          %v1086 = vcombine.low %v1061, %v1069
          %v1088 = vunpack.c.l.s4 1934713408
          %v1089 = vunpack.c.0.s8 %v1088
          %v1090 = vlaneseq
          %v1091 = vshrl.u32 %v1090, 7
          %v1092 = vsub.s32 %v1089, %v1091
          %v1093 = vrot.slane %v1086, %v1092
          %v1094 = vcombine.low %v1077, %v1085
          %v1096 = vunpack.c.l.s4 1934713408
          %v1097 = vunpack.c.0.s8 %v1096
          %v1098 = vlaneseq
          %v1099 = vshrl.u32 %v1098, 7
          %v1100 = vsub.s32 %v1097, %v1099
          %v1101 = vrot.slane %v1094, %v1100
          %v1102 = vcombine.low %v1093, %v1101
          %v1103 = vcombine.high %v1093, %v1101
          %s1104 = smul.u32 %s167, 4
          %s1105 = smul.u32 %s1104, 8
          %s1106 = scalar_lea.vmem %s164, %s1105
          %vm1107 = vcmask 64512
          %1108 = vst.msk [vmem:[%s1106] sm:$0xff] %vm1107, %v1052
          %1109 = vst.msk [vmem:[%s1106 + $0x8] sm:$0xff] %vm1107, %v1053
          %1110 = vst.msk [vmem:[%s1106 + $0x10] sm:$0xff] %vm1107, %v1102
          %1111 = vst.msk [vmem:[%s1106 + $0x18] sm:$0xff] %vm1107, %v1103
        $region33: #{tpu_custom_call.1} parent=23 // loop_footer
          %s171 = sadd.s32 1, %s167
        $region34: #{tpu_custom_call.1} parent=23 // loop_footer_branch
          %166 = sbr.rel target = $region30
        $region35: #{tpu_custom_call.1} parent=23 // loop_exit
          _
        %s1112 = smul.u32 16, %s20
        %p1113 = scmp.lt.s32.totalorder %s19, 1
        %s1114 = scalar_select %p1113, %s19, 1
        %p1115 = scmp.lt.s32.totalorder %s1112, 15
        %s1116 = scalar_select %p1115, %s1112, 15
        %s1117 = smul.addr %s1114, 16
        %s1118 = sadd.s32 %s1116, %s1117
        %s1119 = smul.addr %s1118, 8
        %s1120 = scalar_lea.vmem %s1, %s1119
        // Predicated region
        $region36: #{tpu_custom_call.1} parent=23 // pred_check
          %p1121 = pneg %p75
        $region37: #{tpu_custom_call.1} parent=23 // pred_check_branch
          %1123 = sbr.rel (%p1121) target = $region39
        $region38: #{tpu_custom_call.1} parent=23 // pred_region
          %s1124 = smul.u32 16, %s20
        $region39: #{tpu_custom_call.1} parent=23 // pred_fallthru
          _
      $region24: #{tpu_custom_call.1} parent=5 // pred_fallthru
        _
      %p1125 = scmp.le.s32.totalorder 2, %s10
      // Predicated region
      $region40: #{tpu_custom_call.1} parent=5 // pred_check
        %p1126 = pneg %p1125
      $region41: #{tpu_custom_call.1} parent=5 // pred_check_branch
        %1128 = sbr.rel (%p1126) target = $region43
      $region42: #{tpu_custom_call.1} parent=5 // pred_region
        %s1129 = ssub.s32 %s10, 2
        // Predicated region
        $region44: #{tpu_custom_call.1} parent=42 // pred_check
          %p1130 = pneg %p81
        $region45: #{tpu_custom_call.1} parent=42 // pred_check_branch
          %1132 = sbr.rel (%p1130) target = $region47
        $region46: #{tpu_custom_call.1} parent=42 // pred_region
          %s1133 = smul.u32 16, %s22
          %p1134 = scmp.lt.s32.totalorder %s21, 1
          %s1135 = scalar_select %p1134, %s21, 1
          %p1136 = scmp.lt.s32.totalorder %s1133, 15
          %s1137 = scalar_select %p1136, %s1133, 15
          %s1138 = smul.addr %s1135, 16
          %s1139 = sadd.s32 %s1137, %s1138
          %s1140 = smul.addr %s1139, 8
          %s1141 = scalar_lea.vmem %s1, %s1140
        $region47: #{tpu_custom_call.1} parent=42 // pred_fallthru
          _
      $region43: #{tpu_custom_call.1} parent=5 // pred_fallthru
        _
    $region6: #{tpu_custom_call.1} parent=1 // loop_footer
      %s14 = sadd.s32 1, %s10
    $region7: #{tpu_custom_call.1} parent=1 // loop_footer_branch
      %9 = sbr.rel target = $region3
    $region8: #{tpu_custom_call.1} parent=1 // loop_exit
      _
    %1142 = vsyncpa [#allocation3], 1
    %s1143 = scalar_lea.sflag [#allocation3], 1
    %1144 = vsyncpa %s1143, 1

</llo_original>
